<compile_context>
chip_gen: v6e
topology: v6e:2x2x1
jax: 0.10.0
libtpu: 0.0.40
codegen_flags: <defaults>
</compile_context>

<pallas_src>
import functools

import jax
import jax.numpy as jnp
from jax.experimental import pallas as pl
from jax.experimental.pallas import tpu as pltpu


# ---------------------------------------------------------------------------
# Generation-aware VMEM budget
# ---------------------------------------------------------------------------

def _vmem_cap_bytes():
    try:
        cap = int(pltpu.get_tpu_info().vmem_capacity_bytes)
    except Exception:
        cap = 64 << 20          # conservative: v7x per-TensorCore VMEM
    return max((cap * 3) // 4, 16 << 20)


_VMEM_CAP = _vmem_cap_bytes()


def _clamp_vmem(need_bytes):
    return int(min(max(int(need_bytes), 32 << 20), _VMEM_CAP))


# ---------------------------------------------------------------------------
# Tile pickers (prefer large tiles, but keep >=2 steps on a parallel axis)
# ---------------------------------------------------------------------------

def _pick_tile_m(m):
    for t in (1024, 512, 256, 128, 64):
        if m % t == 0 and m // t >= 2:
            return t
    for t in (1024, 512, 256, 128, 64, 32, 16, 8):
        if m % t == 0:
            return t
    return m


def _pick_tile_n(n):
    if n % 128 == 0:
        for t in (256, 128):
            if n % t == 0:
                return t
    return n


def _pick_tile_k(k):
    if k >= 512 and k % 128 == 0:
        for t in (512, 384, 256, 128):
            if k % t == 0:
                return t
    return k


# ---------------------------------------------------------------------------
# Fused  GEMM (K-tiled) + BatchNorm (+ residual) (+ ReLU)  Pallas kernel
# ---------------------------------------------------------------------------

def _make_gemm_kernel(has_residual: bool, relu: bool):
    def kernel(*refs):
        if has_residual:
            x_ref, w_ref, s_ref, b_ref, r_ref, o_ref, acc_ref = refs
        else:
            x_ref, w_ref, s_ref, b_ref, o_ref, acc_ref = refs
            r_ref = None
        kk = pl.program_id(2)

        @pl.when(kk == 0)
        def _():
            acc_ref[...] = jnp.zeros_like(acc_ref)

        acc_ref[...] += jnp.dot(x_ref[...], w_ref[...],
                                preferred_element_type=jnp.float32)

        @pl.when(kk == pl.num_programs(2) - 1)
        def _():
            y = acc_ref[...] * s_ref[...] + b_ref[...]
            if r_ref is not None:
                y = y + r_ref[...].astype(jnp.float32)
            if relu:
                y = jnp.maximum(y, 0.0)
            o_ref[...] = y.astype(o_ref.dtype)

    return kernel


def fused_gemm_bn_act(a, w, scale, bias, residual=None, relu=True,
                      out_dtype=jnp.bfloat16):
    """y = [relu]((a @ w) * scale + bias [+ residual]) as one Pallas TPU kernel."""
    a = a.astype(jnp.bfloat16)
    w = w.astype(jnp.bfloat16)
    M, Ka = a.shape
    Kw, N = w.shape
    if Ka < Kw:                                   # weight K pre-padded (stem)
        a = jnp.pad(a, ((0, 0), (0, Kw - Ka)))
    K = Kw

    tm = _pick_tile_m(M)
    tn = _pick_tile_n(N)
    tk = _pick_tile_k(K)
    grid = (M // tm, N // tn, K // tk)

    s2d = scale.reshape(1, N).astype(jnp.float32)
    b2d = bias.reshape(1, N).astype(jnp.float32)

    in_specs = [
        pl.BlockSpec((tm, tk), lambda i, j, kk: (i, kk)),   # activations
        pl.BlockSpec((tk, tn), lambda i, j, kk: (kk, j)),   # weights
        pl.BlockSpec((1, tn), lambda i, j, kk: (0, j)),     # folded BN scale
        pl.BlockSpec((1, tn), lambda i, j, kk: (0, j)),     # folded BN bias
    ]
    args = [a, w, s2d, b2d]
    has_res = residual is not None
    if has_res:
        in_specs.append(pl.BlockSpec((tm, tn), lambda i, j, kk: (i, j)))
        args.append(residual.astype(jnp.bfloat16))

    flops = 2 * M * K * N + 4 * M * N
    bytes_accessed = 2 * (M * K * (N // tn) + K * N * (M // tm)
                          + (1 + int(has_res)) * M * N) + 8 * N
    cost = pl.CostEstimate(flops=int(flops), transcendentals=0,
                           bytes_accessed=int(bytes_accessed))

    out_isz = jnp.dtype(out_dtype).itemsize
    need = (2 * (tm * tk + tk * tn) * 2            # double-buffered bf16 inputs
            + 2 * 2 * tn * 4                       # scale / bias blocks
            + (2 * tm * tn * 2 if has_res else 0)  # residual blocks
            + 2 * tm * tn * out_isz                # output blocks
            + tm * tn * 4                          # f32 accumulator
            + (4 << 20))

    out = pl.pallas_call(
        _make_gemm_kernel(has_res, relu),
        out_shape=jax.ShapeDtypeStruct((M, N), out_dtype),
        grid_spec=pltpu.PrefetchScalarGridSpec(
            num_scalar_prefetch=0,
            grid=grid,
            in_specs=in_specs,
            out_specs=pl.BlockSpec((tm, tn), lambda i, j, kk: (i, j)),
            scratch_shapes=[pltpu.VMEM((tm, tn), jnp.float32)],
        ),
        compiler_params=pltpu.CompilerParams(
            dimension_semantics=("parallel", "parallel", "arbitrary"),
            vmem_limit_bytes=_clamp_vmem(need),
        ),
        cost_estimate=cost,
    )(*args)
    return out


# ---------------------------------------------------------------------------
# 3x3 stride-1 conv + BN + ReLU with the 9 taps folded into the kernel
# (no im2col patch materialization).  Works on a flattened, spatially padded
# NHWC plane; tap (i, j) is a constant row-offset i*(W+2)+j into that plane.
# ---------------------------------------------------------------------------

def _make_tap3_kernel(mv, wp, relu):
    def kernel(x_ref, w_ref, s_ref, b_ref, o_ref):
        acc = jnp.zeros((mv, o_ref.shape[-1]), jnp.float32)
        for t in range(9):
            i, j = divmod(t, 3)
            off = i * wp + j
            acc = acc + jnp.dot(x_ref[pl.ds(off, mv), :], w_ref[t],
                                preferred_element_type=jnp.float32)
        y = acc * s_ref[...] + b_ref[...]
        if relu:
            y = jnp.maximum(y, 0.0)
        o_ref[...] = y.astype(o_ref.dtype)

    return kernel


def conv3x3_s1_bn_act(x_nhwc, w9, scale, bias, relu=True):
    n, h, wd, cin = x_nhwc.shape
    cout = w9.shape[-1]
    wp = wd + 2                        # padded row length
    mv = h * wp                        # virtual output rows per image
    # pad: 1 top, 2 bottom, 1 left/right.  The extra bottom row keeps every
    # tap-shifted window inside the flattened plane; the garbage border
    # columns are sliced off in the wrapper.
    xp = jnp.pad(x_nhwc.astype(jnp.bfloat16), ((0, 0), (1, 2), (1, 1), (0, 0)))
    flat = (h + 3) * wp
    xf = xp.reshape(n, flat, cin)

    tco = 256 if cout % 256 == 0 else (128 if cout % 128 == 0 else cout)
    grid = (n, cout // tco)
    s2d = scale.reshape(1, cout).astype(jnp.float32)
    b2d = bias.reshape(1, cout).astype(jnp.float32)

    flops = 2 * 9 * n * mv * cin * cout
    bytes_accessed = 2 * (n * flat * cin + 9 * cin * cout + n * mv * cout) + 8 * cout
    cost = pl.CostEstimate(flops=int(flops), transcendentals=0,
                           bytes_accessed=int(bytes_accessed))
    need = (2 * (flat * cin + 9 * cin * tco + mv * tco) * 2
            + mv * tco * 4 + 2 * 2 * tco * 4 + (4 << 20))

    out = pl.pallas_call(
        _make_tap3_kernel(mv, wp, relu),
        out_shape=jax.ShapeDtypeStruct((n, mv, cout), jnp.bfloat16),
        grid_spec=pltpu.PrefetchScalarGridSpec(
            num_scalar_prefetch=0,
            grid=grid,
            in_specs=[
                pl.BlockSpec((None, flat, cin), lambda b, c: (b, 0, 0)),
                pl.BlockSpec((9, cin, tco), lambda b, c: (0, 0, c)),
                pl.BlockSpec((1, tco), lambda b, c: (0, c)),
                pl.BlockSpec((1, tco), lambda b, c: (0, c)),
            ],
            out_specs=pl.BlockSpec((None, mv, tco), lambda b, c: (b, 0, c)),
        ),
        compiler_params=pltpu.CompilerParams(
            dimension_semantics=("parallel", "parallel"),
            vmem_limit_bytes=_clamp_vmem(need),
        ),
        cost_estimate=cost,
    )(xf, w9.astype(jnp.bfloat16), s2d, b2d)
    # drop the garbage virtual border columns
    return out.reshape(n, h, wp, cout)[:, :, :wd, :]


# ---------------------------------------------------------------------------
# Conv / pool plumbing (NHWC internally; channels are lane-dense)
# ---------------------------------------------------------------------------

def _im2col(x_nhwc, k, stride, pad):
    # TODO(synk): strided convs (7x7 stem, one 3x3 s2) still materialize bf16
    # patches via XLA ops; folding strided taps into the kernel needs a
    # phase-split (space-to-depth) and is left out.
    n, h, w, c = x_nhwc.shape
    xp = jnp.pad(x_nhwc, ((0, 0), (pad, pad), (pad, pad), (0, 0)))
    ho = (h + 2 * pad - k) // stride + 1
    wo = (w + 2 * pad - k) // stride + 1
    cols = []
    for i in range(k):
        for j in range(k):
            cols.append(xp[:, i:i + stride * (ho - 1) + 1:stride,
                            j:j + stride * (wo - 1) + 1:stride, :])
    patches = jnp.concatenate(cols, axis=-1)               # (n, ho, wo, k*k*c)
    return patches.reshape(n * ho * wo, k * k * c), ho, wo


def _conv_bn_act_ref(x, p, k, stride, relu, residual=None):
    w4 = p["w4"].astype(jnp.float32)                        # (Cout, Cin, k, k)
    y = jax.lax.conv_general_dilated(
        x.astype(jnp.float32), jnp.transpose(w4, (2, 3, 1, 0)),
        window_strides=(stride, stride),
        padding=[(k // 2, k // 2), (k // 2, k // 2)],
        dimension_numbers=("NHWC", "HWIO", "NHWC"))
    y = y * p["scale"][None, None, None, :] + p["bias"][None, None, None, :]
    if residual is not None:
        y = y + residual.astype(jnp.float32)
    if relu:
        y = jnp.maximum(y, 0.0)
    return y


def conv_bn_act(x_nhwc, p, k, stride, relu, residual_nhwc=None, use_pallas=True):
    if not use_pallas:
        return _conv_bn_act_ref(x_nhwc, p, k, stride, relu, residual_nhwc)

    w = p["w"]
    scale, bias = p["scale"], p["bias"]
    n, h, wd, cin = x_nhwc.shape

    if k == 1:
        if stride > 1:
            x_nhwc = x_nhwc[:, ::stride, ::stride, :]
        _, ho, wo, _ = x_nhwc.shape
        a = x_nhwc.reshape(n * ho * wo, cin)
        cout = w.shape[-1]
        r2d = (residual_nhwc.reshape(n * ho * wo, cout)
               if residual_nhwc is not None else None)
        y = fused_gemm_bn_act(a, w, scale, bias, r2d, relu)
        return y.reshape(n, ho, wo, cout)

    if w.ndim == 3 and stride == 1:
        # 3x3 stride-1: taps folded into the Pallas kernel.
        cout = w.shape[-1]
        if (h + 3) * (wd + 2) * max(cin, cout) * 4 <= (8 << 20):
            assert residual_nhwc is None
            return conv3x3_s1_bn_act(x_nhwc, w, scale, bias, relu)
        # TODO(synk): tile the spatial rows for very large planes instead of
        # falling back to im2col.
        w = w.reshape(-1, cout)

    a, ho, wo = _im2col(x_nhwc, k, stride, k // 2)
    cout = w.shape[-1]
    r2d = (residual_nhwc.reshape(n * ho * wo, cout)
           if residual_nhwc is not None else None)
    y = fused_gemm_bn_act(a, w, scale, bias, r2d, relu)
    return y.reshape(n, ho, wo, cout)


def maxpool_3x3_s2_p1(x_nhwc):
    # TODO(synk): max-pool runs as plain XLA shifted-max ops (no Pallas kernel).
    n, h, w, c = x_nhwc.shape
    neg = float(jnp.finfo(x_nhwc.dtype).min)
    xp = jnp.pad(x_nhwc, ((0, 0), (1, 1), (1, 1), (0, 0)), constant_values=neg)
    ho = (h + 2 - 3) // 2 + 1
    wo = (w + 2 - 3) // 2 + 1
    out = None
    for i in range(3):
        for j in range(3):
            v = xp[:, i:i + 2 * (ho - 1) + 1:2, j:j + 2 * (wo - 1) + 1:2, :]
            out = v if out is None else jnp.maximum(out, v)
    return out


# ---------------------------------------------------------------------------
# ResNet-50 backbone parameters (random init, inference-mode BN folded).
# GEMM-ready weight layouts (and bf16 cast) are precomputed here, once.
# Only arrays live in the params pytree; strides/kernel sizes are static.
# ---------------------------------------------------------------------------

def _conv_bn_params(key, cin, cout, k, kind):
    kw, kg, kb, km, kv = jax.random.split(key, 5)
    fan_in = cin * k * k
    w = jax.random.normal(kw, (cout, cin, k, k), jnp.float32) * jnp.sqrt(2.0 / fan_in)
    w = w.astype(jnp.bfloat16).astype(jnp.float32)   # shared canonical values
    gamma = 1.0 + 0.1 * jax.random.normal(kg, (cout,), jnp.float32)
    beta = 0.1 * jax.random.normal(kb, (cout,), jnp.float32)
    mean = 0.1 * jax.random.normal(km, (cout,), jnp.float32)
    var = 0.5 + jax.random.uniform(kv, (cout,), jnp.float32)
    scale = gamma * jax.lax.rsqrt(var + 1e-5)
    bias = beta - mean * scale

    if kind == "1x1":
        wp = w[:, :, 0, 0].T                                       # (Cin, Cout)
    elif kind == "tap3":
        wp = jnp.transpose(w, (2, 3, 1, 0)).reshape(k * k, cin, cout)
    else:  # im2col
        wp = jnp.transpose(w, (2, 3, 1, 0)).reshape(k * k * cin, cout)
        kpad = (-wp.shape[0]) % 8
        if kpad:
            wp = jnp.pad(wp, ((0, kpad), (0, 0)))
    return {"w": wp.astype(jnp.bfloat16), "w4": w, "scale": scale, "bias": bias}


def _make_layer(key, inplanes, planes, num_blocks, stride):
    blocks = []
    keys = jax.random.split(key, num_blocks)
    for b in range(num_blocks):
        k1, k2, k3, k4 = jax.random.split(keys[b], 4)
        cin = inplanes if b == 0 else planes * 4
        bstride = stride if b == 0 else 1
        blk = {
            "conv1": _conv_bn_params(k1, cin, planes, 1, "1x1"),
            "conv2": _conv_bn_params(k2, planes, planes, 3,
                                     "tap3" if bstride == 1 else "im2col"),
            "conv3": _conv_bn_params(k3, planes, planes * 4, 1, "1x1"),
        }
        if b == 0:
            blk["downsample"] = _conv_bn_params(k4, cin, planes * 4, 1, "1x1")
        blocks.append(blk)
    return blocks


def make_resnet50_params(key):
    ks, k1, k2, k3 = jax.random.split(key, 4)
    return {
        "stem": _conv_bn_params(ks, 3, 64, 7, "im2col"),
        "layer1": _make_layer(k1, 64, 64, 3, 1),
        "layer2": _make_layer(k2, 256, 128, 4, 2),
        # conv4_block1 strides are forced to (1, 1) in the PyTorch module,
        # so layer3 keeps layer2's spatial resolution.
        "layer3": _make_layer(k3, 512, 256, 6, 1),
    }


def _bottleneck(x, blk, stride, use_pallas):
    if "downsample" in blk:
        identity = conv_bn_act(x, blk["downsample"], 1, stride, relu=False,
                               use_pallas=use_pallas)
    else:
        identity = x
    out = conv_bn_act(x, blk["conv1"], 1, 1, relu=True, use_pallas=use_pallas)
    out = conv_bn_act(out, blk["conv2"], 3, stride, relu=True, use_pallas=use_pallas)
    # Residual add + final ReLU are fused into the conv3 GEMM epilogue.
    return conv_bn_act(out, blk["conv3"], 1, 1, relu=True,
                       residual_nhwc=identity, use_pallas=use_pallas)


def resnet_forward(params, x_nchw, use_pallas=True):
    """Mirrors ResNet.forward: returns (x, x_, out_, out) in NCHW."""
    x = jnp.transpose(x_nchw, (0, 2, 3, 1))                 # NHWC internally
    x = x.astype(jnp.bfloat16) if use_pallas else x.astype(jnp.float32)
    x = conv_bn_act(x, params["stem"], 7, 2, relu=True, use_pallas=use_pallas)
    feat_x = x                                              # early_extractor
    h = maxpool_3x3_s2_p1(x)                                # early_extractor_
    for blk in params["layer1"]:
        h = _bottleneck(h, blk, 1, use_pallas)
    feat_x_ = h
    for bi, blk in enumerate(params["layer2"]):             # later_extractor_
        h = _bottleneck(h, blk, 2 if bi == 0 else 1, use_pallas)
    feat_out_ = h
    for blk in params["layer3"]:                            # later_extractor
        h = _bottleneck(h, blk, 1, use_pallas)
    feat_out = h
    nchw = lambda t: jnp.transpose(t.astype(jnp.float32), (0, 3, 1, 2))
    return nchw(feat_x), nchw(feat_x_), nchw(feat_out_), nchw(feat_out)


# ---------------------------------------------------------------------------

if __name__ == "__main__":
    key = jax.random.PRNGKey(0)
    kp, kx, ka, kw_, kr = jax.random.split(key, 5)

    # --- unit check of the fused GEMM + BN + residual + ReLU kernel ---------
    M, K, N = 256, 147, 64
    a = jax.random.normal(ka, (M, K), jnp.float32)
    w = jax.random.normal(kw_, (K, N), jnp.float32) / jnp.sqrt(K)
    scale = 1.0 + 0.1 * jax.random.normal(jax.random.fold_in(ka, 1), (N,), jnp.float32)
    bias = 0.1 * jax.random.normal(jax.random.fold_in(ka, 2), (N,), jnp.float32)
    res = jax.random.normal(kr, (M, N), jnp.float32)
    got = jax.block_until_ready(
        fused_gemm_bn_act(a, w, scale, bias, residual=res, relu=True))
    a16 = a.astype(jnp.bfloat16).astype(jnp.float32)
    w16 = w.astype(jnp.bfloat16).astype(jnp.float32)
    r16 = res.astype(jnp.bfloat16).astype(jnp.float32)
    want = jnp.maximum(jnp.dot(a16, w16) * scale[None, :] + bias[None, :] + r16, 0.0)
    assert bool(jnp.allclose(got.astype(jnp.float32), want,
                             rtol=5e-2, atol=5e-2)), "fused GEMM kernel mismatch"

    # --- full ResNet multi-scale forward (single jit for each path) ---------
    params = make_resnet50_params(kp)
    x = jax.random.normal(kx, (2, 3, 64, 64), jnp.float32)

    fwd_pallas = jax.jit(functools.partial(resnet_forward, use_pallas=True))
    fwd_ref = jax.jit(functools.partial(resnet_forward, use_pallas=False))

    outs = jax.block_until_ready(fwd_pallas(params, x))
    f_x, f_x_, f_out_, f_out = outs
    assert f_x.shape == (2, 64, 32, 32)
    assert f_x_.shape == (2, 256, 16, 16)
    assert f_out_.shape == (2, 512, 8, 8)
    assert f_out.shape == (2, 1024, 8, 8)

    refs = jax.block_until_ready(fwd_ref(params, x))
    for got_t, ref_t in zip(outs, refs):
        assert bool(jnp.all(jnp.isfinite(got_t))), "non-finite output"
        err = jnp.max(jnp.abs(got_t - ref_t)) / (jnp.max(jnp.abs(ref_t)) + 1e-6)
        assert float(err) < 0.15, f"forward mismatch, rel err {float(err)}"

    print("KERNEL_OK")
</pallas_src>

<mosaic_0001>
module attributes {stable_mosaic.version = 11 : i64} {
  func.func @kernel(%arg0: i32, %arg1: i32, %arg2: i32, %arg3: memref<128x147xbf16, #tpu.memory_space<vmem>>, %arg4: memref<147x64xbf16, #tpu.memory_space<vmem>>, %arg5: memref<1x64xf32, #tpu.memory_space<vmem>>, %arg6: memref<1x64xf32, #tpu.memory_space<vmem>>, %arg7: memref<128x64xbf16, #tpu.memory_space<vmem>>, %arg8: memref<128x64xbf16, #tpu.memory_space<vmem>>, %arg9: memref<128x64xf32, #tpu.memory_space<vmem>>) attributes {dimension_semantics = [#tpu.dimension_semantics<parallel>, #tpu.dimension_semantics<parallel>, #tpu.dimension_semantics<arbitrary>], iteration_bounds = array<i64: 2, 1, 1>, scalar_prefetch = 0 : i64, scratch_operands = 1 : i64, tpu.core_type = #tpu.core_type<tc>, window_params = [{transform_indices = @transform_0, window_bounds = array<i64: 128, 147>}, {transform_indices = @transform_1, window_bounds = array<i64: 147, 64>}, {transform_indices = @transform_2, window_bounds = array<i64: 1, 64>}, {transform_indices = @transform_3, window_bounds = array<i64: 1, 64>}, {transform_indices = @transform_4, window_bounds = array<i64: 128, 64>}, {transform_indices = @transform_5, window_bounds = array<i64: 128, 64>}]} {
    %c0_i32 = arith.constant 0 : i32
    %0 = arith.cmpi eq, %arg2, %c0_i32 : i32
    %1 = arith.extui %0 : i1 to i32
    %c0_i32_0 = arith.constant 0 : i32
    %2 = arith.cmpi ne, %1, %c0_i32_0 : i32
    scf.if %2 {
      %cst_10 = arith.constant 0.000000e+00 : f32
      %12 = vector.broadcast %cst_10 : f32 to vector<128x64xf32>
      %c0_11 = arith.constant 0 : index
      %c0_12 = arith.constant 0 : index
      %13 = vector.load %arg9[%c0_11, %c0_12] : memref<128x64xf32, #tpu.memory_space<vmem>>, vector<128x64xf32>
      tpu.vector_store %arg9[%c0_11, %c0_12], %12 {strides = array<i32>} : memref<128x64xf32, #tpu.memory_space<vmem>>, vector<128x64xf32>,
    } else {
    }
    %c0 = arith.constant 0 : index
    %c0_1 = arith.constant 0 : index
    %3 = vector.load %arg9[%c0, %c0_1] : memref<128x64xf32, #tpu.memory_space<vmem>>, vector<128x64xf32>
    %c0_2 = arith.constant 0 : index
    %c0_3 = arith.constant 0 : index
    %4 = vector.load %arg3[%c0_2, %c0_3] : memref<128x147xbf16, #tpu.memory_space<vmem>>, vector<128x147xbf16>
    %c0_4 = arith.constant 0 : index
    %c0_5 = arith.constant 0 : index
    %5 = vector.load %arg4[%c0_4, %c0_5] : memref<147x64xbf16, #tpu.memory_space<vmem>>, vector<147x64xbf16>
    %cst = arith.constant dense<0.000000e+00> : vector<128x64xf32>
    %6 = tpu.matmul %4, %5, %cst {dimension_numbers = #tpu.dot_dimension_numbers<[1], [0], [0], [1], [0, 0, 1, 1], [], []>} : vector<128x147xbf16>, vector<147x64xbf16>, vector<128x64xf32> -> vector<128x64xf32>
    %7 = arith.addf %3, %6 : vector<128x64xf32>
    %c0_6 = arith.constant 0 : index
    %c0_7 = arith.constant 0 : index
    %8 = vector.load %arg9[%c0_6, %c0_7] : memref<128x64xf32, #tpu.memory_space<vmem>>, vector<128x64xf32>
    tpu.vector_store %arg9[%c0_6, %c0_7], %7 {strides = array<i32>} : memref<128x64xf32, #tpu.memory_space<vmem>>, vector<128x64xf32>,
    %c0_i32_8 = arith.constant 0 : i32
    %9 = arith.cmpi eq, %arg2, %c0_i32_8 : i32
    %10 = arith.extui %9 : i1 to i32
    %c0_i32_9 = arith.constant 0 : i32
    %11 = arith.cmpi ne, %10, %c0_i32_9 : i32
    scf.if %11 {
      %c0_10 = arith.constant 0 : index
      %c0_11 = arith.constant 0 : index
      %12 = vector.load %arg9[%c0_10, %c0_11] : memref<128x64xf32, #tpu.memory_space<vmem>>, vector<128x64xf32>
      %c0_12 = arith.constant 0 : index
      %c0_13 = arith.constant 0 : index
      %13 = vector.load %arg5[%c0_12, %c0_13] : memref<1x64xf32, #tpu.memory_space<vmem>>, vector<1x64xf32>
      %14 = vector.broadcast %13 : vector<1x64xf32> to vector<128x64xf32>
      %15 = arith.mulf %12, %14 : vector<128x64xf32>
      %c0_14 = arith.constant 0 : index
      %c0_15 = arith.constant 0 : index
      %16 = vector.load %arg6[%c0_14, %c0_15] : memref<1x64xf32, #tpu.memory_space<vmem>>, vector<1x64xf32>
      %17 = vector.broadcast %16 : vector<1x64xf32> to vector<128x64xf32>
      %18 = arith.addf %15, %17 : vector<128x64xf32>
      %c0_16 = arith.constant 0 : index
      %c0_17 = arith.constant 0 : index
      %19 = vector.load %arg7[%c0_16, %c0_17] : memref<128x64xbf16, #tpu.memory_space<vmem>>, vector<128x64xbf16>
      %20 = arith.extf %19 : vector<128x64xbf16> to vector<128x64xf32>
      %21 = arith.addf %18, %20 : vector<128x64xf32>
      %cst_18 = arith.constant 0.000000e+00 : f32
      %22 = vector.broadcast %cst_18 : f32 to vector<128x64xf32>
      %23 = arith.maximumf %21, %22 : vector<128x64xf32>
      %24 = arith.truncf %23 : vector<128x64xf32> to vector<128x64xbf16>
      %c0_19 = arith.constant 0 : index
      %c0_20 = arith.constant 0 : index
      %25 = vector.load %arg8[%c0_19, %c0_20] : memref<128x64xbf16, #tpu.memory_space<vmem>>, vector<128x64xbf16>
      tpu.vector_store %arg8[%c0_19, %c0_20], %24 {strides = array<i32>} : memref<128x64xbf16, #tpu.memory_space<vmem>>, vector<128x64xbf16>,
    } else {
    }
    return
  }
  func.func @transform_0(%arg0: i32, %arg1: i32, %arg2: i32) -> (i32, i32) {
    %c0_i32 = arith.constant 0 : i32
    return %arg0, %arg2 : i32, i32
  }
  func.func @transform_1(%arg0: i32, %arg1: i32, %arg2: i32) -> (i32, i32) {
    %c0_i32 = arith.constant 0 : i32
    return %arg2, %arg1 : i32, i32
  }
  func.func @transform_2(%arg0: i32, %arg1: i32, %arg2: i32) -> (i32, i32) {
    %c0_i32 = arith.constant 0 : i32
    %c0_i32_0 = arith.constant 0 : i32
    return %c0_i32, %arg1 : i32, i32
  }
  func.func @transform_3(%arg0: i32, %arg1: i32, %arg2: i32) -> (i32, i32) {
    %c0_i32 = arith.constant 0 : i32
    %c0_i32_0 = arith.constant 0 : i32
    return %c0_i32, %arg1 : i32, i32
  }
  func.func @transform_4(%arg0: i32, %arg1: i32, %arg2: i32) -> (i32, i32) {
    %c0_i32 = arith.constant 0 : i32
    return %arg0, %arg1 : i32, i32
  }
  func.func @transform_5(%arg0: i32, %arg1: i32, %arg2: i32) -> (i32, i32) {
    %c0_i32 = arith.constant 0 : i32
    return %arg0, %arg1 : i32, i32
  }
}

</mosaic_0001>

<llo_original>
// kernel: tpu_custom_call.1
$region0: #{tpu_custom_call.1}
  #allocation0 [shape = 'u32[]', space=smem, size = 0x4, offset = 0x4, fixed_abs, tag = 'smem constant byte address 0x4 - core index']
  #allocation1 [shape = 'u32[144,128]{1,0:T(1,128)}', space=vmem, size = 0x12000, scoped, tag = 'internal scratch']
  #allocation2 [shape = 'f32[128,64]{1,0:T(8,128)}', space=vmem, size = 0x10000, scoped, tag = 'scratch operand']
  %s0 = inlined_call_operand.vmem [shape: bf16[256,147], index: 0, kind: input, shape index: {}]
  %s1 = inlined_call_operand.vmem [shape: bf16[147,64], index: 1, kind: input, shape index: {}]
  %s2 = inlined_call_operand.vmem [shape: f32[1,64], index: 2, kind: input, shape index: {}]
  %s3 = inlined_call_operand.vmem [shape: f32[1,64], index: 3, kind: input, shape index: {}]
  %s4 = inlined_call_operand.vmem [shape: bf16[256,64], index: 4, kind: input, shape index: {}]
  %s5 = inlined_call_operand.vmem [shape: bf16[256,64], index: 5, kind: output, shape index: {}]
  %s6 = sld [smem:[#allocation0]]
  $region61: #{tpu_custom_call.1} parent=0
    _
  %s8 = ssub.s32 1, %s6
  %s9 = scalar_select 0, %s8, %s6
  loop: start=0, step=1, limit=4
  $region2: #{tpu_custom_call.1} parent=0 // loop_pre_header
    _
  $region3: #{tpu_custom_call.1} parent=0 // loop_header
    %s11 = sphi 0, %s15
    %p12 = scmp.ge.s32.totalorder %s11, 4
    %s18 = sphi 0, %s37
    %s19 = sphi 0, %s33
    %s20 = sphi 0, %s29
    %s21 = sphi 0, %s18
    %s22 = sphi 0, %s19
    %s23 = sphi 0, %s20
    %s24 = sphi 0, %s21
    %s25 = sphi 0, %s22
    %s26 = sphi 0, %s23
    %s42 = sphi 0, %s44
    %s45 = sphi 0, %s42
    %s46 = sphi 0, %s45
    %s62 = sphi 0, %s46
    %s70 = sphi 0, %s72
    %s73 = sphi 0, %s70
    %s74 = sphi 0, %s73
    %s90 = sphi 0, %s74
    %s96 = sphi 0, %s98
    %s99 = sphi 0, %s96
    %s100 = sphi 0, %s99
    %s116 = sphi 0, %s100
    %s122 = sphi 0, %s124
    %s125 = sphi 0, %s122
    %s126 = sphi 0, %s125
    %s142 = sphi 0, %s126
    %s150 = sphi 0, %s152
    %s153 = sphi 0, %s150
    %s154 = sphi 0, %s153
    %s170 = sphi 0, %s154
    %s178 = sphi 0, %s180
    %s181 = sphi 0, %s178
    %s182 = sphi 0, %s181
    %s198 = sphi 0, %s182
  $region4: #{tpu_custom_call.1} parent=0 // loop_header_branch
    %14 = sbr.rel (%p12) target = $region8
  $region5: #{tpu_custom_call.1} parent=0 // loop_body
    %s16 = ssub.s32 %s11, 1
    %s17 = ssub.s32 %s11, 2
    %s27 = sadd.s32 1, %s20
    %p28 = scmp.ge.s32.totalorder %s27, 1
    %s29 = scalar_select %p28, 0, %s27
    %s30 = sadd.s32 1, %s19
    %s31 = scalar_select %p28, %s30, %s19
    %p32 = scmp.ge.s32.totalorder %s31, 1
    %s33 = scalar_select %p32, 0, %s31
    %s34 = sadd.s32 1, %s18
    %s35 = scalar_select %p32, %s34, %s18
    %p36 = scmp.ge.s32.totalorder %s35, 2
    %s37 = scalar_select %p36, 0, %s35
    %s38 = ssub.s32 %s18, %s37
    %s39 = ssub.s32 %s20, %s29
    %s40 = sor.u32 %s38, %s39
    %p41 = scmp.eq.s32.totalorder %s40, 0
    %s43 = sadd.s32 %s42, 1
    %s44 = scalar_select %p41, %s42, %s43
    %p47 = pneg %p41
    %p48 = scmp.eq.s32.totalorder %s11, 1
    %p49 = por %p47, %p48
    %p50 = scmp.ne.s32.totalorder %s42, %s45
    %p51 = scmp.eq.s32.totalorder %s11, 0
    %p52 = por %p50, %p51
    %p53 = scmp.ne.s32.totalorder %s42, %s45
    %p54 = scmp.eq.s32.totalorder %s16, 1
    %p55 = por %p53, %p54
    %p56 = scmp.ne.s32.totalorder %s45, %s46
    %p57 = scmp.eq.s32.totalorder %s16, 0
    %p58 = por %p56, %p57
    %p59 = scmp.ne.s32.totalorder %s45, %s46
    %p60 = scmp.eq.s32.totalorder %s17, 1
    %p61 = por %p59, %p60
    %p63 = scmp.ne.s32.totalorder %s46, %s62
    %p64 = scmp.eq.s32.totalorder %s17, 0
    %p65 = por %p63, %p64
    %s66 = ssub.s32 %s20, %s29
    %s67 = ssub.s32 %s19, %s33
    %s68 = sor.u32 %s66, %s67
    %p69 = scmp.eq.s32.totalorder %s68, 0
    %s71 = sadd.s32 %s70, 1
    %s72 = scalar_select %p69, %s70, %s71
    %p75 = pneg %p69
    %p76 = scmp.eq.s32.totalorder %s11, 1
    %p77 = por %p75, %p76
    %p78 = scmp.ne.s32.totalorder %s70, %s73
    %p79 = scmp.eq.s32.totalorder %s11, 0
    %p80 = por %p78, %p79
    %p81 = scmp.ne.s32.totalorder %s70, %s73
    %p82 = scmp.eq.s32.totalorder %s16, 1
    %p83 = por %p81, %p82
    %p84 = scmp.ne.s32.totalorder %s73, %s74
    %p85 = scmp.eq.s32.totalorder %s16, 0
    %p86 = por %p84, %p85
    %p87 = scmp.ne.s32.totalorder %s73, %s74
    %p88 = scmp.eq.s32.totalorder %s17, 1
    %p89 = por %p87, %p88
    %p91 = scmp.ne.s32.totalorder %s74, %s90
    %p92 = scmp.eq.s32.totalorder %s17, 0
    %p93 = por %p91, %p92
    %s94 = ssub.s32 %s19, %s33
    %p95 = scmp.eq.s32.totalorder %s94, 0
    %s97 = sadd.s32 %s96, 1
    %s98 = scalar_select %p95, %s96, %s97
    %p101 = pneg %p95
    %p102 = scmp.eq.s32.totalorder %s11, 1
    %p103 = por %p101, %p102
    %p104 = scmp.ne.s32.totalorder %s96, %s99
    %p105 = scmp.eq.s32.totalorder %s11, 0
    %p106 = por %p104, %p105
    %p107 = scmp.ne.s32.totalorder %s96, %s99
    %p108 = scmp.eq.s32.totalorder %s16, 1
    %p109 = por %p107, %p108
    %p110 = scmp.ne.s32.totalorder %s99, %s100
    %p111 = scmp.eq.s32.totalorder %s16, 0
    %p112 = por %p110, %p111
    %p113 = scmp.ne.s32.totalorder %s99, %s100
    %p114 = scmp.eq.s32.totalorder %s17, 1
    %p115 = por %p113, %p114
    %p117 = scmp.ne.s32.totalorder %s100, %s116
    %p118 = scmp.eq.s32.totalorder %s17, 0
    %p119 = por %p117, %p118
    %s120 = ssub.s32 %s19, %s33
    %p121 = scmp.eq.s32.totalorder %s120, 0
    %s123 = sadd.s32 %s122, 1
    %s124 = scalar_select %p121, %s122, %s123
    %p127 = pneg %p121
    %p128 = scmp.eq.s32.totalorder %s11, 1
    %p129 = por %p127, %p128
    %p130 = scmp.ne.s32.totalorder %s122, %s125
    %p131 = scmp.eq.s32.totalorder %s11, 0
    %p132 = por %p130, %p131
    %p133 = scmp.ne.s32.totalorder %s122, %s125
    %p134 = scmp.eq.s32.totalorder %s16, 1
    %p135 = por %p133, %p134
    %p136 = scmp.ne.s32.totalorder %s125, %s126
    %p137 = scmp.eq.s32.totalorder %s16, 0
    %p138 = por %p136, %p137
    %p139 = scmp.ne.s32.totalorder %s125, %s126
    %p140 = scmp.eq.s32.totalorder %s17, 1
    %p141 = por %p139, %p140
    %p143 = scmp.ne.s32.totalorder %s126, %s142
    %p144 = scmp.eq.s32.totalorder %s17, 0
    %p145 = por %p143, %p144
    %s146 = ssub.s32 %s18, %s37
    %s147 = ssub.s32 %s19, %s33
    %s148 = sor.u32 %s146, %s147
    %p149 = scmp.eq.s32.totalorder %s148, 0
    %s151 = sadd.s32 %s150, 1
    %s152 = scalar_select %p149, %s150, %s151
    %p155 = pneg %p149
    %p156 = scmp.eq.s32.totalorder %s11, 1
    %p157 = por %p155, %p156
    %p158 = scmp.ne.s32.totalorder %s150, %s153
    %p159 = scmp.eq.s32.totalorder %s11, 0
    %p160 = por %p158, %p159
    %p161 = scmp.ne.s32.totalorder %s150, %s153
    %p162 = scmp.eq.s32.totalorder %s16, 1
    %p163 = por %p161, %p162
    %p164 = scmp.ne.s32.totalorder %s153, %s154
    %p165 = scmp.eq.s32.totalorder %s16, 0
    %p166 = por %p164, %p165
    %p167 = scmp.ne.s32.totalorder %s153, %s154
    %p168 = scmp.eq.s32.totalorder %s17, 1
    %p169 = por %p167, %p168
    %p171 = scmp.ne.s32.totalorder %s154, %s170
    %p172 = scmp.eq.s32.totalorder %s17, 0
    %p173 = por %p171, %p172
    %s174 = ssub.s32 %s18, %s37
    %s175 = ssub.s32 %s19, %s33
    %s176 = sor.u32 %s174, %s175
    %p177 = scmp.eq.s32.totalorder %s176, 0
    %s179 = sadd.s32 %s178, 1
    %s180 = scalar_select %p177, %s178, %s179
    %p183 = pneg %p177
    %p184 = scmp.eq.s32.totalorder %s11, 1
    %p185 = por %p183, %p184
    %p186 = scmp.ne.s32.totalorder %s178, %s181
    %p187 = scmp.eq.s32.totalorder %s11, 0
    %p188 = por %p186, %p187
    %p189 = scmp.ne.s32.totalorder %s178, %s181
    %p190 = scmp.eq.s32.totalorder %s16, 1
    %p191 = por %p189, %p190
    %p192 = scmp.ne.s32.totalorder %s181, %s182
    %p193 = scmp.eq.s32.totalorder %s16, 0
    %p194 = por %p192, %p193
    %p195 = scmp.ne.s32.totalorder %s181, %s182
    %p196 = scmp.eq.s32.totalorder %s17, 1
    %p197 = por %p195, %p196
    %p199 = scmp.ne.s32.totalorder %s182, %s198
    %p200 = scmp.eq.s32.totalorder %s17, 0
    %p201 = por %p199, %p200
    %p202 = scmp.le.s32.totalorder 1, %s11
    %p203 = scmp.lt.s32.totalorder %s11, 3
    %p204 = pnand %p202, %p203
    %p205 = pneg %p204
    // Predicated region
    $region9: #{tpu_custom_call.1} parent=5 // pred_check
      _
    $region10: #{tpu_custom_call.1} parent=5 // pred_check_branch
      %207 = sbr.rel (%p204) target = $region12
    $region11: #{tpu_custom_call.1} parent=5 // pred_region
      %s208 = ssub.s32 %s11, 1
      // Predicated region
      $region13: #{tpu_custom_call.1} parent=11 // pred_check
        %p209 = pneg %p86
      $region14: #{tpu_custom_call.1} parent=11 // pred_check_branch
        %211 = sbr.rel (%p209) target = $region16
      $region15: #{tpu_custom_call.1} parent=11 // pred_region
        %s212 = smul.u32 19, %s23
        %p213 = scmp.lt.s32.totalorder %s212, 18
        %s214 = scalar_select %p213, %s212, 18
        %p215 = scmp.lt.s32.totalorder %s22, 0
        %s216 = scalar_select %p215, %s22, 0
        %s217 = sadd.s32 %s216, %s214
        %s218 = smul.addr %s217, 4
        %s219 = scalar_lea.vmem %s1, %s218
        %s220 = smul.u32 19, %s23
      $region16: #{tpu_custom_call.1} parent=11 // pred_fallthru
        _
      // Predicated region
      $region17: #{tpu_custom_call.1} parent=11 // pred_check
        %p221 = pneg %p112
      $region18: #{tpu_custom_call.1} parent=11 // pred_check_branch
        %223 = sbr.rel (%p221) target = $region20
      $region19: #{tpu_custom_call.1} parent=11 // pred_region
        %p224 = scmp.lt.s32.totalorder %s22, 0
        %s225 = scalar_select %p224, %s22, 0
        %s226 = scalar_lea.vmem %s2, %s225
      $region20: #{tpu_custom_call.1} parent=11 // pred_fallthru
        _
      // Predicated region
      $region21: #{tpu_custom_call.1} parent=11 // pred_check
        %p227 = pneg %p138
      $region22: #{tpu_custom_call.1} parent=11 // pred_check_branch
        %229 = sbr.rel (%p227) target = $region24
      $region23: #{tpu_custom_call.1} parent=11 // pred_region
        %p230 = scmp.lt.s32.totalorder %s22, 0
        %s231 = scalar_select %p230, %s22, 0
        %s232 = scalar_lea.vmem %s3, %s231
      $region24: #{tpu_custom_call.1} parent=11 // pred_fallthru
        _
    $region12: #{tpu_custom_call.1} parent=5 // pred_fallthru
      _
    %p233 = scmp.lt.s32.totalorder %s11, 2
    // Predicated region
    $region25: #{tpu_custom_call.1} parent=5 // pred_check
      %p234 = pneg %p233
    $region26: #{tpu_custom_call.1} parent=5 // pred_check_branch
      %236 = sbr.rel (%p234) target = $region28
    $region27: #{tpu_custom_call.1} parent=5 // pred_region
      // Predicated region
      $region29: #{tpu_custom_call.1} parent=27 // pred_check
        %p237 = pneg %p52
      $region30: #{tpu_custom_call.1} parent=27 // pred_check_branch
        %239 = sbr.rel (%p237) target = $region32
      $region31: #{tpu_custom_call.1} parent=27 // pred_region
        %s240 = smul.u32 16, %s18
        %s241 = smul.u32 2, %s20
        %p242 = scmp.lt.s32.totalorder %s240, 31
        %s243 = scalar_select %p242, %s240, 31
        %p244 = scmp.lt.s32.totalorder %s241, 1
        %s245 = scalar_select %p244, %s241, 1
        %s246 = smul.addr %s243, 2
        %s247 = sadd.s32 %s245, %s246
        %s248 = smul.addr %s247, 4
        %s249 = scalar_lea.vmem %s0, %s248
        %s250 = smul.u32 16, %s18
        %s251 = smul.u32 2, %s20
      $region32: #{tpu_custom_call.1} parent=27 // pred_fallthru
        _
      // Predicated region
      $region33: #{tpu_custom_call.1} parent=27 // pred_check
        %p252 = pneg %p160
      $region34: #{tpu_custom_call.1} parent=27 // pred_check_branch
        %254 = sbr.rel (%p252) target = $region36
      $region35: #{tpu_custom_call.1} parent=27 // pred_region
        %s255 = smul.u32 16, %s18
        %p256 = scmp.lt.s32.totalorder %s255, 31
        %s257 = scalar_select %p256, %s255, 31
        %p258 = scmp.lt.s32.totalorder %s19, 0
        %s259 = scalar_select %p258, %s19, 0
        %s260 = sadd.s32 %s259, %s257
        %s261 = smul.addr %s260, 4
        %s262 = scalar_lea.vmem %s4, %s261
        %s263 = smul.u32 16, %s18
      $region36: #{tpu_custom_call.1} parent=27 // pred_fallthru
        _
    $region28: #{tpu_custom_call.1} parent=5 // pred_fallthru
      _
    %p264 = scmp.le.s32.totalorder 1, %s11
    %p265 = scmp.lt.s32.totalorder %s11, 3
    %p266 = pnand %p264, %p265
    %p267 = pneg %p266
    // Predicated region
    $region37: #{tpu_custom_call.1} parent=5 // pred_check
      _
    $region38: #{tpu_custom_call.1} parent=5 // pred_check_branch
      %269 = sbr.rel (%p266) target = $region40
    $region39: #{tpu_custom_call.1} parent=5 // pred_region
      %s270 = ssub.s32 %s11, 1
      %s271 = smul.u32 16, %s21
      %s272 = smul.u32 2, %s23
      %p273 = scmp.lt.s32.totalorder %s271, 31
      %s274 = scalar_select %p273, %s271, 31
      %p275 = scmp.lt.s32.totalorder %s272, 1
      %s276 = scalar_select %p275, %s272, 1
      %s277 = smul.addr %s274, 2
      %s278 = sadd.s32 %s276, %s277
      %s279 = smul.addr %s278, 4
      %s280 = scalar_lea.vmem %s0, %s279
      %p281 = pneg %p58
      %p282 = pneg %p55
      %s283 = smul.u32 19, %s23
      %p284 = scmp.lt.s32.totalorder %s283, 18
      %s285 = scalar_select %p284, %s283, 18
      %p286 = scmp.lt.s32.totalorder %s22, 0
      %s287 = scalar_select %p286, %s22, 0
      %s288 = sadd.s32 %s287, %s285
      %s289 = smul.addr %s288, 4
      %s290 = scalar_lea.vmem %s1, %s289
      %p291 = pneg %p86
      %p292 = pneg %p83
      %p293 = scmp.lt.s32.totalorder %s22, 0
      %s294 = scalar_select %p293, %s22, 0
      %s295 = scalar_lea.vmem %s2, %s294
      %p296 = pneg %p112
      %p297 = pneg %p109
      %p298 = scmp.lt.s32.totalorder %s22, 0
      %s299 = scalar_select %p298, %s22, 0
      %s300 = scalar_lea.vmem %s3, %s299
      %p301 = pneg %p138
      %p302 = pneg %p135
      %s303 = smul.u32 16, %s21
      %p304 = scmp.lt.s32.totalorder %s303, 31
      %s305 = scalar_select %p304, %s303, 31
      %p306 = scmp.lt.s32.totalorder %s22, 0
      %s307 = scalar_select %p306, %s22, 0
      %s308 = sadd.s32 %s307, %s305
      %s309 = smul.addr %s308, 4
      %s310 = scalar_lea.vmem %s4, %s309
      %p311 = pneg %p166
      %p312 = pneg %p163
      %p313 = pneg %p194
      %p314 = pneg %p191
      %s315 = smul.u32 16, %s21
      %p316 = scmp.lt.s32.totalorder %s315, 31
      %s317 = scalar_select %p316, %s315, 31
      %p318 = scmp.lt.s32.totalorder %s22, 0
      %s319 = scalar_select %p318, %s22, 0
      %s320 = sadd.s32 %s319, %s317
      %s321 = smul.addr %s320, 4
      %s322 = scalar_lea.vmem %s5, %s321
      %s323 = smul.u32 16, %s21
      %s324 = smul.u32 2, %s23
      %p325 = scmp.lt.s32.totalorder %s323, 31
      %s326 = scalar_select %p325, %s323, 31
      %p327 = scmp.lt.s32.totalorder %s324, 1
      %s328 = scalar_select %p327, %s324, 1
      %s329 = smul.addr %s326, 2
      %s330 = sadd.s32 %s328, %s329
      %s331 = smul.addr %s330, 4
      %s332 = scalar_lea.vmem %s0, %s331
      %s333 = smul.u32 16, %s21
      %s334 = smul.u32 2, %s23
      %s335 = smul.u32 19, %s23
      %p336 = scmp.lt.s32.totalorder %s335, 18
      %s337 = scalar_select %p336, %s335, 18
      %p338 = scmp.lt.s32.totalorder %s22, 0
      %s339 = scalar_select %p338, %s22, 0
      %s340 = sadd.s32 %s339, %s337
      %s341 = smul.addr %s340, 4
      %s342 = scalar_lea.vmem %s1, %s341
      %s343 = smul.u32 19, %s23
      %p344 = scmp.lt.s32.totalorder %s22, 0
      %s345 = scalar_select %p344, %s22, 0
      %s346 = scalar_lea.vmem %s2, %s345
      %p347 = scmp.lt.s32.totalorder %s22, 0
      %s348 = scalar_select %p347, %s22, 0
      %s349 = scalar_lea.vmem %s3, %s348
      %s350 = smul.u32 16, %s21
      %p351 = scmp.lt.s32.totalorder %s350, 31
      %s352 = scalar_select %p351, %s350, 31
      %p353 = scmp.lt.s32.totalorder %s22, 0
      %s354 = scalar_select %p353, %s22, 0
      %s355 = sadd.s32 %s354, %s352
      %s356 = smul.addr %s355, 4
      %s357 = scalar_lea.vmem %s4, %s356
      %s358 = smul.u32 16, %s21
      %s359 = smul.u32 16, %s21
      %p360 = scmp.lt.s32.totalorder %s359, 31
      %s361 = scalar_select %p360, %s359, 31
      %p362 = scmp.lt.s32.totalorder %s22, 0
      %s363 = scalar_select %p362, %s22, 0
      %s364 = sadd.s32 %s363, %s361
      %s365 = smul.addr %s364, 4
      %s366 = scalar_lea.vmem %s5, %s365
      %s367 = smul.u32 16, %s21
      %p369 = scmp.eq.s32.totalorder %s23, 0
      // Predicated region
      $region41: #{tpu_custom_call.1} parent=39 // pred_check
        %p370 = pneg %p369
      $region42: #{tpu_custom_call.1} parent=39 // pred_check_branch
        %372 = sbr.rel (%p370) target = $region44
      $region43: #{tpu_custom_call.1} parent=39 // pred_region
        %vm373 = vcmask 523264
        %374 = vst.msk [vmem:[#allocation2] sm:$0xff] %vm373, 0.0
        %375 = vst.msk [vmem:[#allocation2 + $0x8] sm:$0xff] %vm373, 0.0
        %376 = vst.msk [vmem:[#allocation2 + $0x10] sm:$0xff] %vm373, 0.0
        %377 = vst.msk [vmem:[#allocation2 + $0x18] sm:$0xff] %vm373, 0.0
        %378 = vst.msk [vmem:[#allocation2 + $0x20] sm:$0xff] %vm373, 0.0
        %379 = vst.msk [vmem:[#allocation2 + $0x28] sm:$0xff] %vm373, 0.0
        %380 = vst.msk [vmem:[#allocation2 + $0x30] sm:$0xff] %vm373, 0.0
        %381 = vst.msk [vmem:[#allocation2 + $0x38] sm:$0xff] %vm373, 0.0
        %382 = vst.msk [vmem:[#allocation2 + $0x40] sm:$0xff] %vm373, 0.0
        %383 = vst.msk [vmem:[#allocation2 + $0x48] sm:$0xff] %vm373, 0.0
        %384 = vst.msk [vmem:[#allocation2 + $0x50] sm:$0xff] %vm373, 0.0
        %385 = vst.msk [vmem:[#allocation2 + $0x58] sm:$0xff] %vm373, 0.0
        %386 = vst.msk [vmem:[#allocation2 + $0x60] sm:$0xff] %vm373, 0.0
        %387 = vst.msk [vmem:[#allocation2 + $0x68] sm:$0xff] %vm373, 0.0
        %388 = vst.msk [vmem:[#allocation2 + $0x70] sm:$0xff] %vm373, 0.0
        %389 = vst.msk [vmem:[#allocation2 + $0x78] sm:$0xff] %vm373, 0.0
      $region44: #{tpu_custom_call.1} parent=39 // pred_fallthru
        _
      %v390 = vld [vmem:[#allocation2] sm:$0xff]
      %v391 = vld [vmem:[#allocation2 + $0x8] sm:$0xff]
      %v392 = vld [vmem:[#allocation2 + $0x10] sm:$0xff]
      %v393 = vld [vmem:[#allocation2 + $0x18] sm:$0xff]
      %v394 = vld [vmem:[#allocation2 + $0x20] sm:$0xff]
      %v395 = vld [vmem:[#allocation2 + $0x28] sm:$0xff]
      %v396 = vld [vmem:[#allocation2 + $0x30] sm:$0xff]
      %v397 = vld [vmem:[#allocation2 + $0x38] sm:$0xff]
      %v398 = vld [vmem:[#allocation2 + $0x40] sm:$0xff]
      %v399 = vld [vmem:[#allocation2 + $0x48] sm:$0xff]
      %v400 = vld [vmem:[#allocation2 + $0x50] sm:$0xff]
      %v401 = vld [vmem:[#allocation2 + $0x58] sm:$0xff]
      %v402 = vld [vmem:[#allocation2 + $0x60] sm:$0xff]
      %v403 = vld [vmem:[#allocation2 + $0x68] sm:$0xff]
      %v404 = vld [vmem:[#allocation2 + $0x70] sm:$0xff]
      %v405 = vld [vmem:[#allocation2 + $0x78] sm:$0xff]
      %v406 = vld [vmem:[%s332] sm:$0xff]
      %v407 = vld [vmem:[%s332 + $0x8] sm:$0xff]
      %v408 = vld [vmem:[%s332 + $0x10] sm:$0xff]
      %v409 = vld [vmem:[%s332 + $0x18] sm:$0xff]
      %v410 = vld [vmem:[%s332 + $0x20] sm:$0xff]
      %v411 = vld [vmem:[%s332 + $0x28] sm:$0xff]
      %v412 = vld [vmem:[%s332 + $0x30] sm:$0xff]
      %v413 = vld [vmem:[%s332 + $0x38] sm:$0xff]
      %v414 = vld [vmem:[%s332 + $0x40] sm:$0xff]
      %v415 = vld [vmem:[%s332 + $0x48] sm:$0xff]
      %v416 = vld [vmem:[%s332 + $0x50] sm:$0xff]
      %v417 = vld [vmem:[%s332 + $0x58] sm:$0xff]
      %v418 = vld [vmem:[%s332 + $0x60] sm:$0xff]
      %v419 = vld [vmem:[%s332 + $0x68] sm:$0xff]
      %v420 = vld [vmem:[%s332 + $0x70] sm:$0xff]
      %v421 = vld [vmem:[%s332 + $0x78] sm:$0xff]
      %v422 = vld [vmem:[%s342] sm:$0xf]
      %v423 = vld [vmem:[%s342 + $0x4] sm:$0xf]
      %v424 = vld [vmem:[%s342 + $0x8] sm:$0xf]
      %v425 = vld [vmem:[%s342 + $0xc] sm:$0xf]
      %v426 = vld [vmem:[%s342 + $0x10] sm:$0xf]
      %v427 = vld [vmem:[%s342 + $0x14] sm:$0xf]
      %v428 = vld [vmem:[%s342 + $0x18] sm:$0xf]
      %v429 = vld [vmem:[%s342 + $0x1c] sm:$0xf]
      %v430 = vld [vmem:[%s342 + $0x20] sm:$0xf]
      %v431 = vld [vmem:[%s342 + $0x24] sm:$0xf]
      %v432 = vld [vmem:[%s342 + $0x28] sm:$0xf]
      %v433 = vld [vmem:[%s342 + $0x2c] sm:$0xf]
      %v434 = vld [vmem:[%s342 + $0x30] sm:$0xf]
      %v435 = vld [vmem:[%s342 + $0x34] sm:$0xf]
      %v436 = vld [vmem:[%s342 + $0x38] sm:$0xf]
      %v437 = vld [vmem:[%s342 + $0x3c] sm:$0xf]
      %v438 = vld [vmem:[%s342 + $0x40] sm:$0xf]
      %v439 = vld [vmem:[%s342 + $0x44] sm:$0xf]
      %v440 = vld [vmem:[%s342 + $0x48] sm:$0x3]
      %v457 = vunpack.c.l.b16 %v406
      %v458 = vunpack.c.h.b16 %v406
      %v459 = vunpack.c.l.b16 %v407
      %v460 = vunpack.c.h.b16 %v407
      %v461 = vunpack.c.l.b16 %v408
      %v462 = vunpack.c.h.b16 %v408
      %v463 = vunpack.c.l.b16 %v409
      %v464 = vunpack.c.h.b16 %v409
      %v465 = vunpack.c.l.b16 %v410
      %v466 = vunpack.c.h.b16 %v410
      %v467 = vunpack.c.l.b16 %v411
      %v468 = vunpack.c.h.b16 %v411
      %v469 = vunpack.c.l.b16 %v412
      %v470 = vunpack.c.h.b16 %v412
      %v471 = vunpack.c.l.b16 %v413
      %v472 = vunpack.c.h.b16 %v413
      %v473 = vunpack.c.l.b16 %v414
      %v474 = vunpack.c.h.b16 %v414
      %v475 = vunpack.c.l.b16 %v415
      %v476 = vunpack.c.h.b16 %v415
      %v477 = vunpack.c.l.b16 %v416
      %v478 = vunpack.c.h.b16 %v416
      %v479 = vunpack.c.l.b16 %v417
      %v480 = vunpack.c.h.b16 %v417
      %v481 = vunpack.c.l.b16 %v418
      %v482 = vunpack.c.h.b16 %v418
      %v483 = vunpack.c.l.b16 %v419
      %v484 = vunpack.c.h.b16 %v419
      %v485 = vunpack.c.l.b16 %v420
      %v486 = vunpack.c.h.b16 %v420
      %v487 = vunpack.c.l.b16 %v421
      %v488 = vunpack.c.h.b16 %v421
      %v489 = vpack.c.b16 %v459, %v457
      %v490 = vpack.c.b16 %v460, %v458
      %v491 = vpack.c.b16 %v463, %v461
      %v492 = vpack.c.b16 %v464, %v462
      %v493 = vpack.c.b16 %v467, %v465
      %v494 = vpack.c.b16 %v468, %v466
      %v495 = vpack.c.b16 %v471, %v469
      %v496 = vpack.c.b16 %v472, %v470
      %v497 = vpack.c.b16 %v475, %v473
      %v498 = vpack.c.b16 %v476, %v474
      %v499 = vpack.c.b16 %v479, %v477
      %v500 = vpack.c.b16 %v480, %v478
      %v501 = vpack.c.b16 %v483, %v481
      %v502 = vpack.c.b16 %v484, %v482
      %v503 = vpack.c.b16 %v487, %v485
      %v504 = vpack.c.b16 %v488, %v486
      %v532 = vunpack.c.l.b16 %v422
      %v533 = vunpack.c.l.b16 %v423
      %v534 = vunpack.c.l.b16 %v424
      %v535 = vunpack.c.l.b16 %v425
      %v536 = vunpack.c.l.b16 %v426
      %v537 = vunpack.c.l.b16 %v427
      %v538 = vunpack.c.l.b16 %v428
      %v539 = vunpack.c.l.b16 %v429
      %v540 = vunpack.c.l.b16 %v430
      %v541 = vunpack.c.l.b16 %v431
      %v542 = vunpack.c.l.b16 %v432
      %v543 = vunpack.c.l.b16 %v433
      %v544 = vunpack.c.l.b16 %v434
      %v545 = vunpack.c.l.b16 %v435
      %v546 = vunpack.c.l.b16 %v436
      %v547 = vunpack.c.l.b16 %v437
      %v548 = vunpack.c.l.b16 %v438
      %v549 = vunpack.c.l.b16 %v439
      %v550 = vunpack.c.l.b16 %v440
      %v551 = vpack.c.b16 %v533, %v532
      %v552 = vpack.c.b16 %v535, %v534
      %v553 = vpack.c.b16 %v537, %v536
      %v554 = vpack.c.b16 %v539, %v538
      %v555 = vpack.c.b16 %v541, %v540
      %v556 = vpack.c.b16 %v543, %v542
      %v557 = vpack.c.b16 %v545, %v544
      %v558 = vpack.c.b16 %v547, %v546
      %v559 = vpack.c.b16 %v549, %v548
      %v560 = vpack.c.b16 %v550, %v550
      %vm570 = vcmask 154624
      %v572 = vsel %vm570, %v490, 0
      %v575 = vsel %vm570, %v492, 0
      %v578 = vsel %vm570, %v494, 0
      %v581 = vsel %vm570, %v496, 0
      %v584 = vsel %vm570, %v498, 0
      %v587 = vsel %vm570, %v500, 0
      %v590 = vsel %vm570, %v502, 0
      %v593 = vsel %vm570, %v504, 0
      %vm595 = vcmask 1040384
      %vm596 = vcmask 1041408
      %v597 = vsel %vm595, 4294967295, 65535
      %v598 = vsel %vm596, %v597, 0
      %v600 = vand.u32 %v560, %v598
      %602 = vmatprep.subr.bf16.mxu0 0
      %603 = vmatpush1.bf16.msra.mxu0 %v558
      %604 = vmatprep.subr.bf16.mxu0 0
      %605 = vmatpush1.bf16.msra.mxu0 %v557
      %606 = vmatprep.subr.bf16.mxu0 0
      %607 = vmatpush1.bf16.msra.mxu0 %v556
      %608 = vmatprep.subr.bf16.mxu0 0
      %609 = vmatpush1.bf16.msra.mxu0 %v555
      %610 = vmatprep.subr.bf16.mxu0 0
      %611 = vmatpush1.bf16.msra.mxu0 %v554
      %612 = vmatprep.subr.bf16.mxu0 0
      %613 = vmatpush1.bf16.msra.mxu0 %v553
      %614 = vmatprep.subr.bf16.mxu0 0
      %615 = vmatpush1.bf16.msra.mxu0 %v552
      %616 = vmatprep.subr.bf16.mxu0 0
      %617 = vmatpush1.bf16.msra.mxu0 %v551
      %618 = vmatprep.subr.bf16.mxu0 0
      %619 = vmatpush2.bf16.msra.mxu0 0
      %620 = vmatprep.subr.bf16.mxu0 0
      %621 = vmatpush2.bf16.msra.mxu0 0
      %622 = vmatprep.subr.bf16.mxu0 0
      %623 = vmatpush2.bf16.msra.mxu0 0
      %624 = vmatprep.subr.bf16.mxu0 0
      %625 = vmatpush2.bf16.msra.mxu0 0
      %626 = vmatprep.subr.bf16.mxu0 0
      %627 = vmatpush2.bf16.msra.mxu0 0
      %628 = vmatprep.subr.bf16.mxu0 0
      %629 = vmatpush2.bf16.msra.mxu0 0
      %630 = vmatprep.subr.bf16.mxu0 0
      %631 = vmatpush2.bf16.msra.mxu0 %v600
      %632 = vmatprep.subr.bf16.mxu0 0
      %633 = vmatpush2.bf16.msra.mxu0 %v559
      %634 = vmatprep.mubr.bf16.mxu0 %v572
      %635 = vmatmul.mubr.bf16.gmra.mxu0 %v489
      %v636 = vpop.f32.mrf.mxu0
      %v637 = vadd.f32 0.0, %v636
      %v638 = vpop.f32.mrf.mxu0
      %v639 = vpop.f32.mrf.mxu0
      %v640 = vadd.f32 0.0, %v639
      %v641 = vpop.f32.mrf.mxu0
      %642 = vmatprep.mubr.bf16.mxu0 %v575
      %643 = vmatmul.mubr.bf16.gmra.mxu0 %v491
      %v644 = vpop.f32.mrf.mxu0
      %v645 = vadd.f32 0.0, %v644
      %v646 = vpop.f32.mrf.mxu0
      %v647 = vpop.f32.mrf.mxu0
      %v648 = vadd.f32 0.0, %v647
      %v649 = vpop.f32.mrf.mxu0
      %650 = vmatprep.mubr.bf16.mxu0 %v578
      %651 = vmatmul.mubr.bf16.gmra.mxu0 %v493
      %v652 = vpop.f32.mrf.mxu0
      %v653 = vadd.f32 0.0, %v652
      %v654 = vpop.f32.mrf.mxu0
      %v655 = vpop.f32.mrf.mxu0
      %v656 = vadd.f32 0.0, %v655
      %v657 = vpop.f32.mrf.mxu0
      %658 = vmatprep.mubr.bf16.mxu0 %v581
      %659 = vmatmul.mubr.bf16.gmra.mxu0 %v495
      %v660 = vpop.f32.mrf.mxu0
      %v661 = vadd.f32 0.0, %v660
      %v662 = vpop.f32.mrf.mxu0
      %v663 = vpop.f32.mrf.mxu0
      %v664 = vadd.f32 0.0, %v663
      %v665 = vpop.f32.mrf.mxu0
      %666 = vmatprep.mubr.bf16.mxu0 %v584
      %667 = vmatmul.mubr.bf16.gmra.mxu0 %v497
      %v668 = vpop.f32.mrf.mxu0
      %v669 = vadd.f32 0.0, %v668
      %v670 = vpop.f32.mrf.mxu0
      %v671 = vpop.f32.mrf.mxu0
      %v672 = vadd.f32 0.0, %v671
      %v673 = vpop.f32.mrf.mxu0
      %674 = vmatprep.mubr.bf16.mxu0 %v587
      %675 = vmatmul.mubr.bf16.gmra.mxu0 %v499
      %v676 = vpop.f32.mrf.mxu0
      %v677 = vadd.f32 0.0, %v676
      %v678 = vpop.f32.mrf.mxu0
      %v679 = vpop.f32.mrf.mxu0
      %v680 = vadd.f32 0.0, %v679
      %v681 = vpop.f32.mrf.mxu0
      %682 = vmatprep.mubr.bf16.mxu0 %v590
      %683 = vmatmul.mubr.bf16.gmra.mxu0 %v501
      %v684 = vpop.f32.mrf.mxu0
      %v685 = vadd.f32 0.0, %v684
      %v686 = vpop.f32.mrf.mxu0
      %v687 = vpop.f32.mrf.mxu0
      %v688 = vadd.f32 0.0, %v687
      %v689 = vpop.f32.mrf.mxu0
      %690 = vmatprep.mubr.bf16.mxu0 %v593
      %691 = vmatmul.mubr.bf16.gmra.mxu0 %v503
      %v692 = vpop.f32.mrf.mxu0
      %v693 = vadd.f32 0.0, %v692
      %v694 = vpop.f32.mrf.mxu0
      %v695 = vpop.f32.mrf.mxu0
      %v696 = vadd.f32 0.0, %v695
      %v697 = vpop.f32.mrf.mxu0
      %698 = vdwg.mxu0
      %v699 = vadd.f32 %v390, %v637
      %v700 = vadd.f32 %v391, %v640
      %v701 = vadd.f32 %v392, %v645
      %v702 = vadd.f32 %v393, %v648
      %v703 = vadd.f32 %v394, %v653
      %v704 = vadd.f32 %v395, %v656
      %v705 = vadd.f32 %v396, %v661
      %v706 = vadd.f32 %v397, %v664
      %v707 = vadd.f32 %v398, %v669
      %v708 = vadd.f32 %v399, %v672
      %v709 = vadd.f32 %v400, %v677
      %v710 = vadd.f32 %v401, %v680
      %v711 = vadd.f32 %v402, %v685
      %v712 = vadd.f32 %v403, %v688
      %v713 = vadd.f32 %v404, %v693
      %v714 = vadd.f32 %v405, %v696
      %vm715 = vcmask 523264
      %716 = vst.msk [vmem:[#allocation2] sm:$0xff] %vm715, %v699
      %717 = vst.msk [vmem:[#allocation2 + $0x8] sm:$0xff] %vm715, %v700
      %718 = vst.msk [vmem:[#allocation2 + $0x10] sm:$0xff] %vm715, %v701
      %719 = vst.msk [vmem:[#allocation2 + $0x18] sm:$0xff] %vm715, %v702
      %720 = vst.msk [vmem:[#allocation2 + $0x20] sm:$0xff] %vm715, %v703
      %721 = vst.msk [vmem:[#allocation2 + $0x28] sm:$0xff] %vm715, %v704
      %722 = vst.msk [vmem:[#allocation2 + $0x30] sm:$0xff] %vm715, %v705
      %723 = vst.msk [vmem:[#allocation2 + $0x38] sm:$0xff] %vm715, %v706
      %724 = vst.msk [vmem:[#allocation2 + $0x40] sm:$0xff] %vm715, %v707
      %725 = vst.msk [vmem:[#allocation2 + $0x48] sm:$0xff] %vm715, %v708
      %726 = vst.msk [vmem:[#allocation2 + $0x50] sm:$0xff] %vm715, %v709
      %727 = vst.msk [vmem:[#allocation2 + $0x58] sm:$0xff] %vm715, %v710
      %728 = vst.msk [vmem:[#allocation2 + $0x60] sm:$0xff] %vm715, %v711
      %729 = vst.msk [vmem:[#allocation2 + $0x68] sm:$0xff] %vm715, %v712
      %730 = vst.msk [vmem:[#allocation2 + $0x70] sm:$0xff] %vm715, %v713
      %731 = vst.msk [vmem:[#allocation2 + $0x78] sm:$0xff] %vm715, %v714
      // Predicated region
      $region45: #{tpu_custom_call.1} parent=39 // pred_check
        %p732 = pneg %p369
      $region46: #{tpu_custom_call.1} parent=39 // pred_check_branch
        %734 = sbr.rel (%p732) target = $region48
      $region47: #{tpu_custom_call.1} parent=39 // pred_region
        %v735 = vld [vmem:[#allocation2] sm:$0xff]
        %v736 = vld [vmem:[#allocation2 + $0x8] sm:$0xff]
        %v737 = vld [vmem:[#allocation2 + $0x10] sm:$0xff]
        %v738 = vld [vmem:[#allocation2 + $0x18] sm:$0xff]
        %v739 = vld [vmem:[#allocation2 + $0x20] sm:$0xff]
        %v740 = vld [vmem:[#allocation2 + $0x28] sm:$0xff]
        %v741 = vld [vmem:[#allocation2 + $0x30] sm:$0xff]
        %v742 = vld [vmem:[#allocation2 + $0x38] sm:$0xff]
        %v743 = vld [vmem:[#allocation2 + $0x40] sm:$0xff]
        %v744 = vld [vmem:[#allocation2 + $0x48] sm:$0xff]
        %v745 = vld [vmem:[#allocation2 + $0x50] sm:$0xff]
        %v746 = vld [vmem:[#allocation2 + $0x58] sm:$0xff]
        %v747 = vld [vmem:[#allocation2 + $0x60] sm:$0xff]
        %v748 = vld [vmem:[#allocation2 + $0x68] sm:$0xff]
        %v749 = vld [vmem:[#allocation2 + $0x70] sm:$0xff]
        %v750 = vld [vmem:[#allocation2 + $0x78] sm:$0xff]
        %v751 = vld [vmem:[%s346] sm:$0x1]
        %v753 = vlaneseq
        %v754 = vshrl.u32 %v753, 7
        %v755 = vsub.s32 0, %v754
        %v756 = vrot.slane %v751, %v755
        %v758 = vmul.f32 %v735, %v756
        %v759 = vmul.f32 %v736, %v756
        %v760 = vmul.f32 %v737, %v756
        %v761 = vmul.f32 %v738, %v756
        %v762 = vmul.f32 %v739, %v756
        %v763 = vmul.f32 %v740, %v756
        %v764 = vmul.f32 %v741, %v756
        %v765 = vmul.f32 %v742, %v756
        %v766 = vmul.f32 %v743, %v756
        %v767 = vmul.f32 %v744, %v756
        %v768 = vmul.f32 %v745, %v756
        %v769 = vmul.f32 %v746, %v756
        %v770 = vmul.f32 %v747, %v756
        %v771 = vmul.f32 %v748, %v756
        %v772 = vmul.f32 %v749, %v756
        %v773 = vmul.f32 %v750, %v756
        %v774 = vld [vmem:[%s349] sm:$0x1]
        %v776 = vlaneseq
        %v777 = vshrl.u32 %v776, 7
        %v778 = vsub.s32 0, %v777
        %v779 = vrot.slane %v774, %v778
        %v781 = vadd.f32 %v758, %v779
        %v782 = vadd.f32 %v759, %v779
        %v783 = vadd.f32 %v760, %v779
        %v784 = vadd.f32 %v761, %v779
        %v785 = vadd.f32 %v762, %v779
        %v786 = vadd.f32 %v763, %v779
        %v787 = vadd.f32 %v764, %v779
        %v788 = vadd.f32 %v765, %v779
        %v789 = vadd.f32 %v766, %v779
        %v790 = vadd.f32 %v767, %v779
        %v791 = vadd.f32 %v768, %v779
        %v792 = vadd.f32 %v769, %v779
        %v793 = vadd.f32 %v770, %v779
        %v794 = vadd.f32 %v771, %v779
        %v795 = vadd.f32 %v772, %v779
        %v796 = vadd.f32 %v773, %v779
        %v797 = vld [vmem:[%s357] sm:$0xf]
        %v798 = vld [vmem:[%s357 + $0x4] sm:$0xf]
        %v799 = vld [vmem:[%s357 + $0x8] sm:$0xf]
        %v800 = vld [vmem:[%s357 + $0xc] sm:$0xf]
        %v801 = vld [vmem:[%s357 + $0x10] sm:$0xf]
        %v802 = vld [vmem:[%s357 + $0x14] sm:$0xf]
        %v803 = vld [vmem:[%s357 + $0x18] sm:$0xf]
        %v804 = vld [vmem:[%s357 + $0x1c] sm:$0xf]
        %v805 = vld [vmem:[%s357 + $0x20] sm:$0xf]
        %v806 = vld [vmem:[%s357 + $0x24] sm:$0xf]
        %v807 = vld [vmem:[%s357 + $0x28] sm:$0xf]
        %v808 = vld [vmem:[%s357 + $0x2c] sm:$0xf]
        %v809 = vld [vmem:[%s357 + $0x30] sm:$0xf]
        %v810 = vld [vmem:[%s357 + $0x34] sm:$0xf]
        %v811 = vld [vmem:[%s357 + $0x38] sm:$0xf]
        %v812 = vld [vmem:[%s357 + $0x3c] sm:$0xf]
        %v813 = vunpack.c.l.bf16 %v797
        %v814 = vunpack.c.l.bf16 %v798
        %v815 = vunpack.c.l.bf16 %v799
        %v816 = vunpack.c.l.bf16 %v800
        %v817 = vunpack.c.l.bf16 %v801
        %v818 = vunpack.c.l.bf16 %v802
        %v819 = vunpack.c.l.bf16 %v803
        %v820 = vunpack.c.l.bf16 %v804
        %v821 = vunpack.c.l.bf16 %v805
        %v822 = vunpack.c.l.bf16 %v806
        %v823 = vunpack.c.l.bf16 %v807
        %v824 = vunpack.c.l.bf16 %v808
        %v825 = vunpack.c.l.bf16 %v809
        %v826 = vunpack.c.l.bf16 %v810
        %v827 = vunpack.c.l.bf16 %v811
        %v828 = vunpack.c.l.bf16 %v812
        %v829 = vadd.f32 %v781, %v813
        %v830 = vadd.f32 %v782, %v814
        %v831 = vadd.f32 %v783, %v815
        %v832 = vadd.f32 %v784, %v816
        %v833 = vadd.f32 %v785, %v817
        %v834 = vadd.f32 %v786, %v818
        %v835 = vadd.f32 %v787, %v819
        %v836 = vadd.f32 %v788, %v820
        %v837 = vadd.f32 %v789, %v821
        %v838 = vadd.f32 %v790, %v822
        %v839 = vadd.f32 %v791, %v823
        %v840 = vadd.f32 %v792, %v824
        %v841 = vadd.f32 %v793, %v825
        %v842 = vadd.f32 %v794, %v826
        %v843 = vadd.f32 %v795, %v827
        %v844 = vadd.f32 %v796, %v828
        %v845 = vmax.f32 %v829, 0.0
        %v846 = vmax.f32 %v830, 0.0
        %v847 = vmax.f32 %v831, 0.0
        %v848 = vmax.f32 %v832, 0.0
        %v849 = vmax.f32 %v833, 0.0
        %v850 = vmax.f32 %v834, 0.0
        %v851 = vmax.f32 %v835, 0.0
        %v852 = vmax.f32 %v836, 0.0
        %v853 = vmax.f32 %v837, 0.0
        %v854 = vmax.f32 %v838, 0.0
        %v855 = vmax.f32 %v839, 0.0
        %v856 = vmax.f32 %v840, 0.0
        %v857 = vmax.f32 %v841, 0.0
        %v858 = vmax.f32 %v842, 0.0
        %v859 = vmax.f32 %v843, 0.0
        %v860 = vmax.f32 %v844, 0.0
        %v861 = vpack.c.bf16 %v846, %v845
        %v862 = vpack.c.bf16 %v848, %v847
        %v863 = vpack.c.bf16 %v850, %v849
        %v864 = vpack.c.bf16 %v852, %v851
        %v865 = vpack.c.bf16 %v854, %v853
        %v866 = vpack.c.bf16 %v856, %v855
        %v867 = vpack.c.bf16 %v858, %v857
        %v868 = vpack.c.bf16 %v860, %v859
        %v877 = vunpack.c.l.b16 %v861
        %v878 = vunpack.c.h.b16 %v861
        %v879 = vunpack.c.l.b16 %v862
        %v880 = vunpack.c.h.b16 %v862
        %v881 = vunpack.c.l.b16 %v863
        %v882 = vunpack.c.h.b16 %v863
        %v883 = vunpack.c.l.b16 %v864
        %v884 = vunpack.c.h.b16 %v864
        %v885 = vunpack.c.l.b16 %v865
        %v886 = vunpack.c.h.b16 %v865
        %v887 = vunpack.c.l.b16 %v866
        %v888 = vunpack.c.h.b16 %v866
        %v889 = vunpack.c.l.b16 %v867
        %v890 = vunpack.c.h.b16 %v867
        %v891 = vunpack.c.l.b16 %v868
        %v892 = vunpack.c.h.b16 %v868
        %v893 = vpack.c.b16 %v877, %v877
        %v894 = vpack.c.b16 %v878, %v878
        %v895 = vpack.c.b16 %v879, %v879
        %v896 = vpack.c.b16 %v880, %v880
        %v897 = vpack.c.b16 %v881, %v881
        %v898 = vpack.c.b16 %v882, %v882
        %v899 = vpack.c.b16 %v883, %v883
        %v900 = vpack.c.b16 %v884, %v884
        %v901 = vpack.c.b16 %v885, %v885
        %v902 = vpack.c.b16 %v886, %v886
        %v903 = vpack.c.b16 %v887, %v887
        %v904 = vpack.c.b16 %v888, %v888
        %v905 = vpack.c.b16 %v889, %v889
        %v906 = vpack.c.b16 %v890, %v890
        %v907 = vpack.c.b16 %v891, %v891
        %v908 = vpack.c.b16 %v892, %v892
        %vm925 = vcmask 519168
        %926 = vst.msk [vmem:[%s366] sm:$0xf] %vm925, %v893
        %927 = vst.msk [vmem:[%s366 + $0x4] sm:$0xf] %vm925, %v894
        %928 = vst.msk [vmem:[%s366 + $0x8] sm:$0xf] %vm925, %v895
        %929 = vst.msk [vmem:[%s366 + $0xc] sm:$0xf] %vm925, %v896
        %930 = vst.msk [vmem:[%s366 + $0x10] sm:$0xf] %vm925, %v897
        %931 = vst.msk [vmem:[%s366 + $0x14] sm:$0xf] %vm925, %v898
        %932 = vst.msk [vmem:[%s366 + $0x18] sm:$0xf] %vm925, %v899
        %933 = vst.msk [vmem:[%s366 + $0x1c] sm:$0xf] %vm925, %v900
        %934 = vst.msk [vmem:[%s366 + $0x20] sm:$0xf] %vm925, %v901
        %935 = vst.msk [vmem:[%s366 + $0x24] sm:$0xf] %vm925, %v902
        %936 = vst.msk [vmem:[%s366 + $0x28] sm:$0xf] %vm925, %v903
        %937 = vst.msk [vmem:[%s366 + $0x2c] sm:$0xf] %vm925, %v904
        %938 = vst.msk [vmem:[%s366 + $0x30] sm:$0xf] %vm925, %v905
        %939 = vst.msk [vmem:[%s366 + $0x34] sm:$0xf] %vm925, %v906
        %940 = vst.msk [vmem:[%s366 + $0x38] sm:$0xf] %vm925, %v907
        %941 = vst.msk [vmem:[%s366 + $0x3c] sm:$0xf] %vm925, %v908
      $region48: #{tpu_custom_call.1} parent=39 // pred_fallthru
        _
      %s942 = smul.u32 16, %s21
      %p943 = scmp.lt.s32.totalorder %s942, 31
      %s944 = scalar_select %p943, %s942, 31
      %p945 = scmp.lt.s32.totalorder %s22, 0
      %s946 = scalar_select %p945, %s22, 0
      %s947 = sadd.s32 %s946, %s944
      %s948 = smul.addr %s947, 4
      %s949 = scalar_lea.vmem %s5, %s948
      // Predicated region
      $region49: #{tpu_custom_call.1} parent=39 // pred_check
        %p950 = pneg %p191
      $region50: #{tpu_custom_call.1} parent=39 // pred_check_branch
        %952 = sbr.rel (%p950) target = $region52
      $region51: #{tpu_custom_call.1} parent=39 // pred_region
        %s953 = smul.u32 16, %s21
      $region52: #{tpu_custom_call.1} parent=39 // pred_fallthru
        _
    $region40: #{tpu_custom_call.1} parent=5 // pred_fallthru
      _
    %p954 = scmp.le.s32.totalorder 2, %s11
    // Predicated region
    $region53: #{tpu_custom_call.1} parent=5 // pred_check
      %p955 = pneg %p954
    $region54: #{tpu_custom_call.1} parent=5 // pred_check_branch
      %957 = sbr.rel (%p955) target = $region56
    $region55: #{tpu_custom_call.1} parent=5 // pred_region
      %s958 = ssub.s32 %s11, 2
      // Predicated region
      $region57: #{tpu_custom_call.1} parent=55 // pred_check
        %p959 = pneg %p197
      $region58: #{tpu_custom_call.1} parent=55 // pred_check_branch
        %961 = sbr.rel (%p959) target = $region60
      $region59: #{tpu_custom_call.1} parent=55 // pred_region
        %s962 = smul.u32 16, %s24
        %p963 = scmp.lt.s32.totalorder %s962, 31
        %s964 = scalar_select %p963, %s962, 31
        %p965 = scmp.lt.s32.totalorder %s25, 0
        %s966 = scalar_select %p965, %s25, 0
        %s967 = sadd.s32 %s966, %s964
        %s968 = smul.addr %s967, 4
        %s969 = scalar_lea.vmem %s5, %s968
      $region60: #{tpu_custom_call.1} parent=55 // pred_fallthru
        _
    $region56: #{tpu_custom_call.1} parent=5 // pred_fallthru
      _
  $region6: #{tpu_custom_call.1} parent=0 // loop_footer
    %s15 = sadd.s32 1, %s11
  $region7: #{tpu_custom_call.1} parent=0 // loop_footer_branch
    %10 = sbr.rel target = $region3
  $region8: #{tpu_custom_call.1} parent=0 // loop_exit
    _

</llo_original>
